<compile_context>
chip_gen: v5e
topology: v5e:2x2
jax: 0.10.0
libtpu: 0.0.40
codegen_flags: <defaults>
</compile_context>

<pallas_src>
import numpy as np
import jax
import jax.numpy as jnp
from jax.experimental import pallas as pl
from jax.experimental.pallas import tpu as pltpu


# -----------------------------------------------------------------------------
# Deterministic filter init (mirrors fspecial_gauss(11, 1.5) from __init__).
# The normalized 2D kernel factors exactly: fspecial_gauss = outer(g1, g1)
# with g1 the normalized 1D Gaussian (no renormalization needed).
# -----------------------------------------------------------------------------
def gauss_1d(size: int = 11, sigma: float = 1.5) -> np.ndarray:
    ax = np.arange(-size // 2 + 1, size // 2 + 1, dtype=np.float64)
    e = np.exp(-(ax ** 2) / (2.0 * sigma ** 2))
    return e / e.sum()  # float64, normalized 1D taps


def fspecial_gauss(size: int = 11, sigma: float = 1.5) -> np.ndarray:
    g1 = gauss_1d(size, sigma)
    return np.outer(g1, g1).astype(np.float32)  # (11, 11), used by the reference


# -----------------------------------------------------------------------------
# VMEM budget / channel-block selection helpers.
# -----------------------------------------------------------------------------
def _vmem_limit_bytes() -> int:
    """~75% of physical VMEM, capped at 96 MiB; safe fallback if query fails."""
    try:
        phys = int(pltpu.get_tpu_info().vmem_capacity_bytes)
    except Exception:
        phys = 64 * 1024 * 1024  # conservative: v7x physical per-TC VMEM
    return min((phys * 3) // 4, 96 * 1024 * 1024)


def _pick_channel_block(C: int, H: int, W: int, budget_bytes: int) -> int:
    """Largest divisor of C whose per-step working-set estimate fits budget."""
    for cb in range(C, 0, -1):
        if C % cb != 0:
            continue
        # rough f32 estimate: 2x double-buffered src/tgt tiles + packed slabs
        # + filtered maps + SSIM temporaries + in-kernel Toeplitz matrices.
        est = cb * H * W * 4 * 30 + 4 * (H * H + W * W) + (1 << 20)
        if est <= budget_bytes:
            return cb
    return 1


# -----------------------------------------------------------------------------
# Pallas kernel: one (image, channel-block) per grid step.
# -----------------------------------------------------------------------------
def make_ssim_kernel(cb: int, H: int, W: int, K: int, taps):
    Ho, Wo = H - K + 1, W - K + 1
    k1 = 0.01 ** 2
    k2 = 0.03 ** 2

    def kernel(src_ref, tgt_ref, out_ref):
        # --- in-kernel banded Toeplitz weights from the 11 compile-time taps.
        def toeplitz(n_rows, n_cols, lower):
            r = jax.lax.broadcasted_iota(jnp.int32, (n_rows, n_cols), 0)
            c = jax.lax.broadcasted_iota(jnp.int32, (n_rows, n_cols), 1)
            d = (r - c) if lower else (c - r)
            t = jnp.zeros((n_rows, n_cols), jnp.float32)
            for k in range(K):
                t = jnp.where(d == k, jnp.float32(taps[k]), t)
            return t

        tv = toeplitz(Ho, H, lower=False)  # (Ho, H): (tv @ x)[o] = sum_k g[k] x[o+k]
        th = toeplitz(W, Wo, lower=True)   # (W, Wo): (x @ th)[:, q] = sum_k g[k] x[:, q+k]

        src = src_ref[...].astype(jnp.float32)  # (cb, H, W)
        tgt = tgt_ref[...].astype(jnp.float32)  # (cb, H, W)

        # Pack channels along the lane axis, then the five map types.
        sl = jnp.concatenate([src[c] for c in range(cb)], axis=1)  # (H, cb*W)
        tl = jnp.concatenate([tgt[c] for c in range(cb)], axis=1)  # (H, cb*W)
        x = jnp.concatenate([sl, tl, sl * sl, tl * tl, sl * tl], axis=1)  # (H, 5*cb*W)

        # Vertical Gaussian pass: ONE matmul for all 5*cb maps.
        v = jnp.dot(tv, x, preferred_element_type=jnp.float32)  # (Ho, 5*cb*W)

        # Restack maps along the sublane axis, then ONE horizontal matmul.
        vs = jnp.concatenate(
            [v[:, j * W:(j + 1) * W] for j in range(5 * cb)], axis=0)  # (5*cb*Ho, W)
        y = jnp.dot(vs, th, preferred_element_type=jnp.float32)        # (5*cb*Ho, Wo)

        # Slice out the five filtered map groups (channels stacked inside each).
        G = cb * Ho
        mu1 = y[0 * G:1 * G]
        mu2 = y[1 * G:2 * G]
        e_ss = y[2 * G:3 * G]
        e_tt = y[3 * G:4 * G]
        e_st = y[4 * G:5 * G]

        mu1_sq = mu1 * mu1
        mu2_sq = mu2 * mu2
        mu1_mu2 = mu1 * mu2
        sigma1_sq = e_ss - mu1_sq
        sigma2_sq = e_tt - mu2_sq
        sigma12 = e_st - mu1_mu2

        cs_map = (2.0 * sigma12 + k2) / (sigma1_sq + sigma2_sq + k2)
        cs_map = jnp.maximum(cs_map, 0.0)  # relu
        ssim_map = (2.0 * mu1_mu2 + k1) / (mu1_sq + mu2_sq + k1) * cs_map

        # Per-(image, channel-block) partial sum; no cross-step accumulation.
        total = jnp.sum(ssim_map)
        out_ref[...] = total + jnp.zeros_like(out_ref)

    return kernel


def ssim_pallas(source: jax.Array, target: jax.Array,
                filter_1d: np.ndarray) -> jax.Array:
    """Equivalent of SSIM().forward(source, target): returns a scalar."""
    assert source.shape == target.shape
    N, C, H, W = source.shape
    K = int(filter_1d.shape[0])
    Ho, Wo = H - K + 1, W - K + 1
    assert H >= K and W >= K, "spatial dims must be >= filter size (11)"

    vmem_limit = _vmem_limit_bytes()
    cb = _pick_channel_block(C, H, W, budget_bytes=vmem_limit // 2)
    ncb = C // cb

    taps = tuple(float(t) for t in np.asarray(filter_1d, dtype=np.float64))
    kernel = make_ssim_kernel(cb, H, W, K, taps)

    partial = pl.pallas_call(
        kernel,
        out_shape=jax.ShapeDtypeStruct((N, ncb, 1, 1), jnp.float32),
        grid=(N, ncb),
        in_specs=[
            # cb channels of one image per step; batch dim squeezed away.
            pl.BlockSpec((None, cb, H, W), lambda n, g: (n, g, 0, 0)),
            pl.BlockSpec((None, cb, H, W), lambda n, g: (n, g, 0, 0)),
        ],
        # One distinct (1,1,1,1) output block per grid step -> no dependency,
        # so both grid axes are parallel (megacore-friendly on v7x).
        out_specs=pl.BlockSpec((1, 1, 1, 1), lambda n, g: (n, g, 0, 0)),
        compiler_params=pltpu.CompilerParams(
            dimension_semantics=("parallel", "parallel"),
            vmem_limit_bytes=vmem_limit,
        ),
    )(source, target)

    # ssim(...) returns per-image means over (C, Ho, Wo); forward() then takes
    # the batch mean.  The reduction over N*ncb floats is done in plain JAX.
    per_image_mean = jnp.sum(partial, axis=(1, 2, 3)) / float(C * Ho * Wo)
    return jnp.mean(per_image_mean)


# -----------------------------------------------------------------------------
# Pure-JAX reference (verification only) — uses the full 2D fspecial_gauss.
# -----------------------------------------------------------------------------
def _gaussian_filter_ref(x: jax.Array, w: jax.Array) -> jax.Array:
    C = x.shape[1]
    wf = jnp.broadcast_to(w[None, None, :, :], (C, 1, w.shape[0], w.shape[1]))
    return jax.lax.conv_general_dilated(
        x, wf, window_strides=(1, 1), padding="VALID",
        dimension_numbers=("NCHW", "OIHW", "NCHW"), feature_group_count=C)


def _ssim_ref(source, target, w):
    k1, k2 = 0.01 ** 2, 0.03 ** 2
    mu1 = _gaussian_filter_ref(source, w)
    mu2 = _gaussian_filter_ref(target, w)
    mu1_sq, mu2_sq, mu1_mu2 = mu1 ** 2, mu2 ** 2, mu1 * mu2
    sigma1_sq = _gaussian_filter_ref(source * source, w) - mu1_sq
    sigma2_sq = _gaussian_filter_ref(target * target, w) - mu2_sq
    sigma12 = _gaussian_filter_ref(source * target, w) - mu1_mu2
    cs_map = (2 * sigma12 + k2) / (sigma1_sq + sigma2_sq + k2)
    cs_map = jnp.maximum(cs_map, 0.0)
    ssim_map = (2 * mu1_mu2 + k1) / (mu1_sq + mu2_sq + k1) * cs_map
    return jnp.mean(jnp.mean(ssim_map, axis=(1, 2, 3)))


# -----------------------------------------------------------------------------
if __name__ == "__main__":
    key = jax.random.PRNGKey(0)
    k_src, k_tgt = jax.random.split(key)

    N, C, H, W = 2, 3, 16, 16  # small NCHW images (spatial must be >= 11)
    source = jax.random.uniform(k_src, (N, C, H, W), dtype=jnp.float32)
    target = jax.random.uniform(k_tgt, (N, C, H, W), dtype=jnp.float32)

    g1 = gauss_1d(11, 1.5)                 # deterministic 1D taps (as in __init__)
    filter_weight_2d = fspecial_gauss(11, 1.5)

    out = ssim_pallas(source, target, g1)
    out = jax.block_until_ready(out)

    ref = jax.block_until_ready(
        _ssim_ref(source, target, jnp.asarray(filter_weight_2d)))
    np.testing.assert_allclose(np.asarray(out), np.asarray(ref),
                               rtol=1e-5, atol=1e-5)

    print("KERNEL_OK")
</pallas_src>

<mosaic_0001>
module attributes {stable_mosaic.version = 11 : i64} {
  func.func @kernel(%arg0: i32, %arg1: i32, %arg2: memref<1x3x16x16xf32, #tpu.memory_space<vmem>>, %arg3: memref<1x3x16x16xf32, #tpu.memory_space<vmem>>, %arg4: memref<1x1x1x1xf32, #tpu.memory_space<vmem>>) attributes {dimension_semantics = [#tpu.dimension_semantics<parallel>, #tpu.dimension_semantics<parallel>], iteration_bounds = array<i64: 2, 1>, scalar_prefetch = 0 : i64, scratch_operands = 0 : i64, tpu.core_type = #tpu.core_type<tc>, window_params = [{transform_indices = @transform_0, window_bounds = array<i64: 1, 3, 16, 16>}, {transform_indices = @transform_1, window_bounds = array<i64: 1, 3, 16, 16>}, {transform_indices = @transform_2, window_bounds = array<i64: 1, 1, 1, 1>}]} {
    %0 = tpu.iota {dimensions = array<i32: 0>} : vector<6x16xi32>
    %1 = tpu.iota {dimensions = array<i32: 1>} : vector<6x16xi32>
    %2 = arith.subi %1, %0 : vector<6x16xi32>
    %cst = arith.constant 0.000000e+00 : f32
    %3 = vector.broadcast %cst : f32 to vector<6x16xf32>
    %c0_i32 = arith.constant 0 : i32
    %4 = vector.broadcast %c0_i32 : i32 to vector<6x16xi32>
    %5 = arith.cmpi eq, %2, %4 : vector<6x16xi32>
    %cst_0 = arith.constant 0.00102838012 : f32
    %6 = vector.broadcast %cst_0 : f32 to vector<6x16xf32>
    %7 = arith.select %5, %6, %3 : vector<6x16xi1>, vector<6x16xf32>
    %c1_i32 = arith.constant 1 : i32
    %8 = vector.broadcast %c1_i32 : i32 to vector<6x16xi32>
    %9 = arith.cmpi eq, %2, %8 : vector<6x16xi32>
    %cst_1 = arith.constant 0.00759875821 : f32
    %10 = vector.broadcast %cst_1 : f32 to vector<6x16xf32>
    %11 = arith.select %9, %10, %7 : vector<6x16xi1>, vector<6x16xf32>
    %c2_i32 = arith.constant 2 : i32
    %12 = vector.broadcast %c2_i32 : i32 to vector<6x16xi32>
    %13 = arith.cmpi eq, %2, %12 : vector<6x16xi32>
    %cst_2 = arith.constant 0.0360007733 : f32
    %14 = vector.broadcast %cst_2 : f32 to vector<6x16xf32>
    %15 = arith.select %13, %14, %11 : vector<6x16xi1>, vector<6x16xf32>
    %c3_i32 = arith.constant 3 : i32
    %16 = vector.broadcast %c3_i32 : i32 to vector<6x16xi32>
    %17 = arith.cmpi eq, %2, %16 : vector<6x16xi32>
    %cst_3 = arith.constant 0.109360687 : f32
    %18 = vector.broadcast %cst_3 : f32 to vector<6x16xf32>
    %19 = arith.select %17, %18, %15 : vector<6x16xi1>, vector<6x16xf32>
    %c4_i32 = arith.constant 4 : i32
    %20 = vector.broadcast %c4_i32 : i32 to vector<6x16xi32>
    %21 = arith.cmpi eq, %2, %20 : vector<6x16xi32>
    %cst_4 = arith.constant 0.213005543 : f32
    %22 = vector.broadcast %cst_4 : f32 to vector<6x16xf32>
    %23 = arith.select %21, %22, %19 : vector<6x16xi1>, vector<6x16xf32>
    %c5_i32 = arith.constant 5 : i32
    %24 = vector.broadcast %c5_i32 : i32 to vector<6x16xi32>
    %25 = arith.cmpi eq, %2, %24 : vector<6x16xi32>
    %cst_5 = arith.constant 0.266011715 : f32
    %26 = vector.broadcast %cst_5 : f32 to vector<6x16xf32>
    %27 = arith.select %25, %26, %23 : vector<6x16xi1>, vector<6x16xf32>
    %c6_i32 = arith.constant 6 : i32
    %28 = vector.broadcast %c6_i32 : i32 to vector<6x16xi32>
    %29 = arith.cmpi eq, %2, %28 : vector<6x16xi32>
    %cst_6 = arith.constant 0.213005543 : f32
    %30 = vector.broadcast %cst_6 : f32 to vector<6x16xf32>
    %31 = arith.select %29, %30, %27 : vector<6x16xi1>, vector<6x16xf32>
    %c7_i32 = arith.constant 7 : i32
    %32 = vector.broadcast %c7_i32 : i32 to vector<6x16xi32>
    %33 = arith.cmpi eq, %2, %32 : vector<6x16xi32>
    %cst_7 = arith.constant 0.109360687 : f32
    %34 = vector.broadcast %cst_7 : f32 to vector<6x16xf32>
    %35 = arith.select %33, %34, %31 : vector<6x16xi1>, vector<6x16xf32>
    %c8_i32 = arith.constant 8 : i32
    %36 = vector.broadcast %c8_i32 : i32 to vector<6x16xi32>
    %37 = arith.cmpi eq, %2, %36 : vector<6x16xi32>
    %cst_8 = arith.constant 0.0360007733 : f32
    %38 = vector.broadcast %cst_8 : f32 to vector<6x16xf32>
    %39 = arith.select %37, %38, %35 : vector<6x16xi1>, vector<6x16xf32>
    %c9_i32 = arith.constant 9 : i32
    %40 = vector.broadcast %c9_i32 : i32 to vector<6x16xi32>
    %41 = arith.cmpi eq, %2, %40 : vector<6x16xi32>
    %cst_9 = arith.constant 0.00759875821 : f32
    %42 = vector.broadcast %cst_9 : f32 to vector<6x16xf32>
    %43 = arith.select %41, %42, %39 : vector<6x16xi1>, vector<6x16xf32>
    %c10_i32 = arith.constant 10 : i32
    %44 = vector.broadcast %c10_i32 : i32 to vector<6x16xi32>
    %45 = arith.cmpi eq, %2, %44 : vector<6x16xi32>
    %cst_10 = arith.constant 0.00102838012 : f32
    %46 = vector.broadcast %cst_10 : f32 to vector<6x16xf32>
    %47 = arith.select %45, %46, %43 : vector<6x16xi1>, vector<6x16xf32>
    %48 = tpu.iota {dimensions = array<i32: 0>} : vector<16x6xi32>
    %49 = tpu.iota {dimensions = array<i32: 1>} : vector<16x6xi32>
    %50 = arith.subi %48, %49 : vector<16x6xi32>
    %cst_11 = arith.constant 0.000000e+00 : f32
    %51 = vector.broadcast %cst_11 : f32 to vector<16x6xf32>
    %c0_i32_12 = arith.constant 0 : i32
    %52 = vector.broadcast %c0_i32_12 : i32 to vector<16x6xi32>
    %53 = arith.cmpi eq, %50, %52 : vector<16x6xi32>
    %cst_13 = arith.constant 0.00102838012 : f32
    %54 = vector.broadcast %cst_13 : f32 to vector<16x6xf32>
    %55 = arith.select %53, %54, %51 : vector<16x6xi1>, vector<16x6xf32>
    %c1_i32_14 = arith.constant 1 : i32
    %56 = vector.broadcast %c1_i32_14 : i32 to vector<16x6xi32>
    %57 = arith.cmpi eq, %50, %56 : vector<16x6xi32>
    %cst_15 = arith.constant 0.00759875821 : f32
    %58 = vector.broadcast %cst_15 : f32 to vector<16x6xf32>
    %59 = arith.select %57, %58, %55 : vector<16x6xi1>, vector<16x6xf32>
    %c2_i32_16 = arith.constant 2 : i32
    %60 = vector.broadcast %c2_i32_16 : i32 to vector<16x6xi32>
    %61 = arith.cmpi eq, %50, %60 : vector<16x6xi32>
    %cst_17 = arith.constant 0.0360007733 : f32
    %62 = vector.broadcast %cst_17 : f32 to vector<16x6xf32>
    %63 = arith.select %61, %62, %59 : vector<16x6xi1>, vector<16x6xf32>
    %c3_i32_18 = arith.constant 3 : i32
    %64 = vector.broadcast %c3_i32_18 : i32 to vector<16x6xi32>
    %65 = arith.cmpi eq, %50, %64 : vector<16x6xi32>
    %cst_19 = arith.constant 0.109360687 : f32
    %66 = vector.broadcast %cst_19 : f32 to vector<16x6xf32>
    %67 = arith.select %65, %66, %63 : vector<16x6xi1>, vector<16x6xf32>
    %c4_i32_20 = arith.constant 4 : i32
    %68 = vector.broadcast %c4_i32_20 : i32 to vector<16x6xi32>
    %69 = arith.cmpi eq, %50, %68 : vector<16x6xi32>
    %cst_21 = arith.constant 0.213005543 : f32
    %70 = vector.broadcast %cst_21 : f32 to vector<16x6xf32>
    %71 = arith.select %69, %70, %67 : vector<16x6xi1>, vector<16x6xf32>
    %c5_i32_22 = arith.constant 5 : i32
    %72 = vector.broadcast %c5_i32_22 : i32 to vector<16x6xi32>
    %73 = arith.cmpi eq, %50, %72 : vector<16x6xi32>
    %cst_23 = arith.constant 0.266011715 : f32
    %74 = vector.broadcast %cst_23 : f32 to vector<16x6xf32>
    %75 = arith.select %73, %74, %71 : vector<16x6xi1>, vector<16x6xf32>
    %c6_i32_24 = arith.constant 6 : i32
    %76 = vector.broadcast %c6_i32_24 : i32 to vector<16x6xi32>
    %77 = arith.cmpi eq, %50, %76 : vector<16x6xi32>
    %cst_25 = arith.constant 0.213005543 : f32
    %78 = vector.broadcast %cst_25 : f32 to vector<16x6xf32>
    %79 = arith.select %77, %78, %75 : vector<16x6xi1>, vector<16x6xf32>
    %c7_i32_26 = arith.constant 7 : i32
    %80 = vector.broadcast %c7_i32_26 : i32 to vector<16x6xi32>
    %81 = arith.cmpi eq, %50, %80 : vector<16x6xi32>
    %cst_27 = arith.constant 0.109360687 : f32
    %82 = vector.broadcast %cst_27 : f32 to vector<16x6xf32>
    %83 = arith.select %81, %82, %79 : vector<16x6xi1>, vector<16x6xf32>
    %c8_i32_28 = arith.constant 8 : i32
    %84 = vector.broadcast %c8_i32_28 : i32 to vector<16x6xi32>
    %85 = arith.cmpi eq, %50, %84 : vector<16x6xi32>
    %cst_29 = arith.constant 0.0360007733 : f32
    %86 = vector.broadcast %cst_29 : f32 to vector<16x6xf32>
    %87 = arith.select %85, %86, %83 : vector<16x6xi1>, vector<16x6xf32>
    %c9_i32_30 = arith.constant 9 : i32
    %88 = vector.broadcast %c9_i32_30 : i32 to vector<16x6xi32>
    %89 = arith.cmpi eq, %50, %88 : vector<16x6xi32>
    %cst_31 = arith.constant 0.00759875821 : f32
    %90 = vector.broadcast %cst_31 : f32 to vector<16x6xf32>
    %91 = arith.select %89, %90, %87 : vector<16x6xi1>, vector<16x6xf32>
    %c10_i32_32 = arith.constant 10 : i32
    %92 = vector.broadcast %c10_i32_32 : i32 to vector<16x6xi32>
    %93 = arith.cmpi eq, %50, %92 : vector<16x6xi32>
    %cst_33 = arith.constant 0.00102838012 : f32
    %94 = vector.broadcast %cst_33 : f32 to vector<16x6xf32>
    %95 = arith.select %93, %94, %91 : vector<16x6xi1>, vector<16x6xf32>
    %c0 = arith.constant 0 : index
    %c0_34 = arith.constant 0 : index
    %c0_35 = arith.constant 0 : index
    %c0_36 = arith.constant 0 : index
    %96 = vector.load %arg2[%c0, %c0_34, %c0_35, %c0_36] : memref<1x3x16x16xf32, #tpu.memory_space<vmem>>, vector<1x3x16x16xf32>
    %97 = vector.shape_cast %96 : vector<1x3x16x16xf32> to vector<3x16x16xf32>
    %c0_37 = arith.constant 0 : index
    %c0_38 = arith.constant 0 : index
    %c0_39 = arith.constant 0 : index
    %c0_40 = arith.constant 0 : index
    %98 = vector.load %arg3[%c0_37, %c0_38, %c0_39, %c0_40] : memref<1x3x16x16xf32, #tpu.memory_space<vmem>>, vector<1x3x16x16xf32>
    %99 = vector.shape_cast %98 : vector<1x3x16x16xf32> to vector<3x16x16xf32>
    %100 = vector.extract_strided_slice %97 {offsets = [0, 0, 0], sizes = [1, 16, 16], strides = [1, 1, 1]} : vector<3x16x16xf32> to vector<1x16x16xf32>
    %101 = vector.shape_cast %100 : vector<1x16x16xf32> to vector<16x16xf32>
    %102 = vector.extract_strided_slice %97 {offsets = [1, 0, 0], sizes = [1, 16, 16], strides = [1, 1, 1]} : vector<3x16x16xf32> to vector<1x16x16xf32>
    %103 = vector.shape_cast %102 : vector<1x16x16xf32> to vector<16x16xf32>
    %104 = vector.extract_strided_slice %97 {offsets = [2, 0, 0], sizes = [1, 16, 16], strides = [1, 1, 1]} : vector<3x16x16xf32> to vector<1x16x16xf32>
    %105 = vector.shape_cast %104 : vector<1x16x16xf32> to vector<16x16xf32>
    %106 = tpu.concatenate %101, %103, %105 in 1 : vector<16x16xf32>, vector<16x16xf32>, vector<16x16xf32> -> vector<16x48xf32>
    %107 = vector.extract_strided_slice %99 {offsets = [0, 0, 0], sizes = [1, 16, 16], strides = [1, 1, 1]} : vector<3x16x16xf32> to vector<1x16x16xf32>
    %108 = vector.shape_cast %107 : vector<1x16x16xf32> to vector<16x16xf32>
    %109 = vector.extract_strided_slice %99 {offsets = [1, 0, 0], sizes = [1, 16, 16], strides = [1, 1, 1]} : vector<3x16x16xf32> to vector<1x16x16xf32>
    %110 = vector.shape_cast %109 : vector<1x16x16xf32> to vector<16x16xf32>
    %111 = vector.extract_strided_slice %99 {offsets = [2, 0, 0], sizes = [1, 16, 16], strides = [1, 1, 1]} : vector<3x16x16xf32> to vector<1x16x16xf32>
    %112 = vector.shape_cast %111 : vector<1x16x16xf32> to vector<16x16xf32>
    %113 = tpu.concatenate %108, %110, %112 in 1 : vector<16x16xf32>, vector<16x16xf32>, vector<16x16xf32> -> vector<16x48xf32>
    %114 = arith.mulf %106, %106 : vector<16x48xf32>
    %115 = arith.mulf %113, %113 : vector<16x48xf32>
    %116 = arith.mulf %106, %113 : vector<16x48xf32>
    %117 = tpu.concatenate %106, %113, %114, %115, %116 in 1 : vector<16x48xf32>, vector<16x48xf32>, vector<16x48xf32>, vector<16x48xf32>, vector<16x48xf32> -> vector<16x240xf32>
    %cst_41 = arith.constant dense<0.000000e+00> : vector<6x240xf32>
    %118 = tpu.matmul %47, %117, %cst_41 {dimension_numbers = #tpu.dot_dimension_numbers<[1], [0], [0], [1], [0, 0, 1, 1], [], []>} : vector<6x16xf32>, vector<16x240xf32>, vector<6x240xf32> -> vector<6x240xf32>
    %119 = vector.extract_strided_slice %118 {offsets = [0, 0], sizes = [6, 16], strides = [1, 1]} : vector<6x240xf32> to vector<6x16xf32>
    %120 = vector.extract_strided_slice %118 {offsets = [0, 16], sizes = [6, 16], strides = [1, 1]} : vector<6x240xf32> to vector<6x16xf32>
    %121 = vector.extract_strided_slice %118 {offsets = [0, 32], sizes = [6, 16], strides = [1, 1]} : vector<6x240xf32> to vector<6x16xf32>
    %122 = vector.extract_strided_slice %118 {offsets = [0, 48], sizes = [6, 16], strides = [1, 1]} : vector<6x240xf32> to vector<6x16xf32>
    %123 = vector.extract_strided_slice %118 {offsets = [0, 64], sizes = [6, 16], strides = [1, 1]} : vector<6x240xf32> to vector<6x16xf32>
    %124 = vector.extract_strided_slice %118 {offsets = [0, 80], sizes = [6, 16], strides = [1, 1]} : vector<6x240xf32> to vector<6x16xf32>
    %125 = vector.extract_strided_slice %118 {offsets = [0, 96], sizes = [6, 16], strides = [1, 1]} : vector<6x240xf32> to vector<6x16xf32>
    %126 = vector.extract_strided_slice %118 {offsets = [0, 112], sizes = [6, 16], strides = [1, 1]} : vector<6x240xf32> to vector<6x16xf32>
    %127 = vector.extract_strided_slice %118 {offsets = [0, 128], sizes = [6, 16], strides = [1, 1]} : vector<6x240xf32> to vector<6x16xf32>
    %128 = vector.extract_strided_slice %118 {offsets = [0, 144], sizes = [6, 16], strides = [1, 1]} : vector<6x240xf32> to vector<6x16xf32>
    %129 = vector.extract_strided_slice %118 {offsets = [0, 160], sizes = [6, 16], strides = [1, 1]} : vector<6x240xf32> to vector<6x16xf32>
    %130 = vector.extract_strided_slice %118 {offsets = [0, 176], sizes = [6, 16], strides = [1, 1]} : vector<6x240xf32> to vector<6x16xf32>
    %131 = vector.extract_strided_slice %118 {offsets = [0, 192], sizes = [6, 16], strides = [1, 1]} : vector<6x240xf32> to vector<6x16xf32>
    %132 = vector.extract_strided_slice %118 {offsets = [0, 208], sizes = [6, 16], strides = [1, 1]} : vector<6x240xf32> to vector<6x16xf32>
    %133 = vector.extract_strided_slice %118 {offsets = [0, 224], sizes = [6, 16], strides = [1, 1]} : vector<6x240xf32> to vector<6x16xf32>
    %134 = tpu.concatenate %119, %120, %121, %122, %123, %124, %125, %126, %127, %128, %129, %130, %131, %132, %133 in 0 : vector<6x16xf32>, vector<6x16xf32>, vector<6x16xf32>, vector<6x16xf32>, vector<6x16xf32>, vector<6x16xf32>, vector<6x16xf32>, vector<6x16xf32>, vector<6x16xf32>, vector<6x16xf32>, vector<6x16xf32>, vector<6x16xf32>, vector<6x16xf32>, vector<6x16xf32>, vector<6x16xf32> -> vector<90x16xf32>
    %cst_42 = arith.constant dense<0.000000e+00> : vector<90x6xf32>
    %135 = tpu.matmul %134, %95, %cst_42 {dimension_numbers = #tpu.dot_dimension_numbers<[1], [0], [0], [1], [0, 0, 1, 1], [], []>} : vector<90x16xf32>, vector<16x6xf32>, vector<90x6xf32> -> vector<90x6xf32>
    %136 = vector.extract_strided_slice %135 {offsets = [0, 0], sizes = [18, 6], strides = [1, 1]} : vector<90x6xf32> to vector<18x6xf32>
    %137 = vector.extract_strided_slice %135 {offsets = [18, 0], sizes = [18, 6], strides = [1, 1]} : vector<90x6xf32> to vector<18x6xf32>
    %138 = vector.extract_strided_slice %135 {offsets = [36, 0], sizes = [18, 6], strides = [1, 1]} : vector<90x6xf32> to vector<18x6xf32>
    %139 = vector.extract_strided_slice %135 {offsets = [54, 0], sizes = [18, 6], strides = [1, 1]} : vector<90x6xf32> to vector<18x6xf32>
    %140 = vector.extract_strided_slice %135 {offsets = [72, 0], sizes = [18, 6], strides = [1, 1]} : vector<90x6xf32> to vector<18x6xf32>
    %141 = arith.mulf %136, %136 : vector<18x6xf32>
    %142 = arith.mulf %137, %137 : vector<18x6xf32>
    %143 = arith.mulf %136, %137 : vector<18x6xf32>
    %144 = arith.subf %138, %141 : vector<18x6xf32>
    %145 = arith.subf %139, %142 : vector<18x6xf32>
    %146 = arith.subf %140, %143 : vector<18x6xf32>
    %cst_43 = arith.constant 2.000000e+00 : f32
    %147 = vector.broadcast %cst_43 : f32 to vector<18x6xf32>
    %148 = arith.mulf %147, %146 : vector<18x6xf32>
    %cst_44 = arith.constant 8.99999984E-4 : f32
    %149 = vector.broadcast %cst_44 : f32 to vector<18x6xf32>
    %150 = arith.addf %148, %149 : vector<18x6xf32>
    %151 = arith.addf %144, %145 : vector<18x6xf32>
    %cst_45 = arith.constant 8.99999984E-4 : f32
    %152 = vector.broadcast %cst_45 : f32 to vector<18x6xf32>
    %153 = arith.addf %151, %152 : vector<18x6xf32>
    %154 = arith.divf %150, %153 : vector<18x6xf32>
    %cst_46 = arith.constant 0.000000e+00 : f32
    %155 = vector.broadcast %cst_46 : f32 to vector<18x6xf32>
    %156 = arith.maximumf %154, %155 : vector<18x6xf32>
    %cst_47 = arith.constant 2.000000e+00 : f32
    %157 = vector.broadcast %cst_47 : f32 to vector<18x6xf32>
    %158 = arith.mulf %157, %143 : vector<18x6xf32>
    %cst_48 = arith.constant 9.99999974E-5 : f32
    %159 = vector.broadcast %cst_48 : f32 to vector<18x6xf32>
    %160 = arith.addf %158, %159 : vector<18x6xf32>
    %161 = arith.addf %141, %142 : vector<18x6xf32>
    %cst_49 = arith.constant 9.99999974E-5 : f32
    %162 = vector.broadcast %cst_49 : f32 to vector<18x6xf32>
    %163 = arith.addf %161, %162 : vector<18x6xf32>
    %164 = arith.divf %160, %163 : vector<18x6xf32>
    %165 = arith.mulf %164, %156 : vector<18x6xf32>
    %166 = vector.shape_cast %165 : vector<18x6xf32> to vector<1x18x6xf32>
    %cst_50 = arith.constant dense<0.000000e+00> : vector<1xf32>
    %167 = vector.multi_reduction <add>, %166, %cst_50 [1, 2] : vector<1x18x6xf32> to vector<1xf32>
    %168 = vector.shape_cast %167 : vector<1xf32> to vector<1x1x1xf32>
    %169 = vector.extract %168[0, 0, 0] : f32 from vector<1x1x1xf32>
    %cst_51 = arith.constant 0.000000e+00 : f32
    %170 = vector.broadcast %cst_51 : f32 to vector<1x1x1x1xf32>
    %171 = vector.broadcast %169 : f32 to vector<1x1x1x1xf32>
    %172 = arith.addf %171, %170 : vector<1x1x1x1xf32>
    %c0_52 = arith.constant 0 : index
    %c0_53 = arith.constant 0 : index
    %c0_54 = arith.constant 0 : index
    %c0_55 = arith.constant 0 : index
    %173 = vector.load %arg4[%c0_52, %c0_53, %c0_54, %c0_55] : memref<1x1x1x1xf32, #tpu.memory_space<vmem>>, vector<1x1x1x1xf32>
    tpu.vector_store %arg4[%c0_52, %c0_53, %c0_54, %c0_55], %172 {strides = array<i32>} : memref<1x1x1x1xf32, #tpu.memory_space<vmem>>, vector<1x1x1x1xf32>,
    return
  }
  func.func @transform_0(%arg0: i32, %arg1: i32) -> (i32, i32, i32, i32) {
    %c0_i32 = arith.constant 0 : i32
    %c0_i32_0 = arith.constant 0 : i32
    %c0_i32_1 = arith.constant 0 : i32
    return %arg0, %arg1, %c0_i32, %c0_i32_0 : i32, i32, i32, i32
  }
  func.func @transform_1(%arg0: i32, %arg1: i32) -> (i32, i32, i32, i32) {
    %c0_i32 = arith.constant 0 : i32
    %c0_i32_0 = arith.constant 0 : i32
    %c0_i32_1 = arith.constant 0 : i32
    return %arg0, %arg1, %c0_i32, %c0_i32_0 : i32, i32, i32, i32
  }
  func.func @transform_2(%arg0: i32, %arg1: i32) -> (i32, i32, i32, i32) {
    %c0_i32 = arith.constant 0 : i32
    %c0_i32_0 = arith.constant 0 : i32
    %c0_i32_1 = arith.constant 0 : i32
    return %arg0, %arg1, %c0_i32, %c0_i32_0 : i32, i32, i32, i32
  }
}

</mosaic_0001>

<llo_original>
// kernel: tpu_custom_call.1
$region0: #{tpu_custom_call.1}
  #allocation0 [shape = 'u32[]', space=smem, size = 0x4, offset = 0x4, fixed_abs, tag = 'smem constant byte address 0x4 - core index']
  #allocation1 [shape = 'u32[72,128]{1,0:T(1,128)}', space=vmem, size = 0x9000, scoped, tag = 'internal scratch']
  %s0 = inlined_call_operand.hbm [shape: f32[2,3,16,16], index: 0, kind: input, shape index: {}]
  %s1 = inlined_call_operand.hbm [shape: f32[2,3,16,16], index: 1, kind: input, shape index: {}]
  %s2 = inlined_call_operand.vmem [shape: f32[2,1,1,1], index: 2, kind: output, shape index: {}]
  %s3 = sld [smem:[#allocation0]]
  $region49: #{tpu_custom_call.1} parent=0
    _
  %s5 = ssub.s32 1, %s3
  %s6 = scalar_select 0, %s5, %s3
  $region1: #{tpu_custom_call.1} parent=0
    #allocation2 [shape = 'u8[49152]{0}', space=vmem, size = 0xc000, scoped, tag = 'input window, operand 0']
    #allocation3 [shape = 's32[2]{0}', space=sflag, size = 0x8, scoped, tag = 'scoped memory for tpu_custom_call.1']
    #allocation4 [shape = 'u8[49152]{0}', space=vmem, size = 0xc000, scoped, tag = 'input window, operand 1']
    #allocation5 [shape = 's32[2]{0}', space=sflag, size = 0x8, scoped, tag = 'scoped memory for tpu_custom_call.1']
    %7 = vsyncpa [#allocation3], 0
    %s8 = scalar_lea.sflag [#allocation3], 1
    %9 = vsyncpa %s8, 0
    %10 = vsyncpa [#allocation5], 0
    %s11 = scalar_lea.sflag [#allocation5], 1
    %12 = vsyncpa %s11, 0
    loop: start=0, step=1, limit=4
    $region2: #{tpu_custom_call.1} parent=1 // loop_pre_header
      _
    $region3: #{tpu_custom_call.1} parent=1 // loop_header
      %s14 = sphi 0, %s18
      %p15 = scmp.ge.s32.totalorder %s14, 4
      %s21 = sphi 0, %s33
      %s22 = sphi 0, %s29
      %s23 = sphi 0, %s21
      %s24 = sphi 0, %s22
      %s25 = sphi 0, %s23
      %s26 = sphi 0, %s24
      %s38 = sphi 0, %s40
      %s41 = sphi 0, %s38
      %s42 = sphi 0, %s41
      %s58 = sphi 0, %s42
      %s66 = sphi 0, %s68
      %s69 = sphi 0, %s66
      %s70 = sphi 0, %s69
      %s86 = sphi 0, %s70
      %s94 = sphi 0, %s96
      %s97 = sphi 0, %s94
      %s98 = sphi 0, %s97
      %s114 = sphi 0, %s98
    $region4: #{tpu_custom_call.1} parent=1 // loop_header_branch
      %17 = sbr.rel (%p15) target = $region8
    $region5: #{tpu_custom_call.1} parent=1 // loop_body
      %s19 = ssub.s32 %s14, 1
      %s20 = ssub.s32 %s14, 2
      %s27 = sadd.s32 1, %s22
      %p28 = scmp.ge.s32.totalorder %s27, 1
      %s29 = scalar_select %p28, 0, %s27
      %s30 = sadd.s32 1, %s21
      %s31 = scalar_select %p28, %s30, %s21
      %p32 = scmp.ge.s32.totalorder %s31, 2
      %s33 = scalar_select %p32, 0, %s31
      %s34 = ssub.s32 %s21, %s33
      %s35 = ssub.s32 %s22, %s29
      %s36 = sor.u32 %s34, %s35
      %p37 = scmp.eq.s32.totalorder %s36, 0
      %s39 = sadd.s32 %s38, 1
      %s40 = scalar_select %p37, %s38, %s39
      %p43 = pneg %p37
      %p44 = scmp.eq.s32.totalorder %s14, 1
      %p45 = por %p43, %p44
      %p46 = scmp.ne.s32.totalorder %s38, %s41
      %p47 = scmp.eq.s32.totalorder %s14, 0
      %p48 = por %p46, %p47
      %p49 = scmp.ne.s32.totalorder %s38, %s41
      %p50 = scmp.eq.s32.totalorder %s19, 1
      %p51 = por %p49, %p50
      %p52 = scmp.ne.s32.totalorder %s41, %s42
      %p53 = scmp.eq.s32.totalorder %s19, 0
      %p54 = por %p52, %p53
      %p55 = scmp.ne.s32.totalorder %s41, %s42
      %p56 = scmp.eq.s32.totalorder %s20, 1
      %p57 = por %p55, %p56
      %p59 = scmp.ne.s32.totalorder %s42, %s58
      %p60 = scmp.eq.s32.totalorder %s20, 0
      %p61 = por %p59, %p60
      %s62 = ssub.s32 %s21, %s33
      %s63 = ssub.s32 %s22, %s29
      %s64 = sor.u32 %s62, %s63
      %p65 = scmp.eq.s32.totalorder %s64, 0
      %s67 = sadd.s32 %s66, 1
      %s68 = scalar_select %p65, %s66, %s67
      %p71 = pneg %p65
      %p72 = scmp.eq.s32.totalorder %s14, 1
      %p73 = por %p71, %p72
      %p74 = scmp.ne.s32.totalorder %s66, %s69
      %p75 = scmp.eq.s32.totalorder %s14, 0
      %p76 = por %p74, %p75
      %p77 = scmp.ne.s32.totalorder %s66, %s69
      %p78 = scmp.eq.s32.totalorder %s19, 1
      %p79 = por %p77, %p78
      %p80 = scmp.ne.s32.totalorder %s69, %s70
      %p81 = scmp.eq.s32.totalorder %s19, 0
      %p82 = por %p80, %p81
      %p83 = scmp.ne.s32.totalorder %s69, %s70
      %p84 = scmp.eq.s32.totalorder %s20, 1
      %p85 = por %p83, %p84
      %p87 = scmp.ne.s32.totalorder %s70, %s86
      %p88 = scmp.eq.s32.totalorder %s20, 0
      %p89 = por %p87, %p88
      %s90 = ssub.s32 %s21, %s33
      %s91 = ssub.s32 %s22, %s29
      %s92 = sor.u32 %s90, %s91
      %p93 = scmp.eq.s32.totalorder %s92, 0
      %s95 = sadd.s32 %s94, 1
      %s96 = scalar_select %p93, %s94, %s95
      %p99 = pneg %p93
      %p100 = scmp.eq.s32.totalorder %s14, 1
      %p101 = por %p99, %p100
      %p102 = scmp.ne.s32.totalorder %s94, %s97
      %p103 = scmp.eq.s32.totalorder %s14, 0
      %p104 = por %p102, %p103
      %p105 = scmp.ne.s32.totalorder %s94, %s97
      %p106 = scmp.eq.s32.totalorder %s19, 1
      %p107 = por %p105, %p106
      %p108 = scmp.ne.s32.totalorder %s97, %s98
      %p109 = scmp.eq.s32.totalorder %s19, 0
      %p110 = por %p108, %p109
      %p111 = scmp.ne.s32.totalorder %s97, %s98
      %p112 = scmp.eq.s32.totalorder %s20, 1
      %p113 = por %p111, %p112
      %p115 = scmp.ne.s32.totalorder %s98, %s114
      %p116 = scmp.eq.s32.totalorder %s20, 0
      %p117 = por %p115, %p116
      %p118 = scmp.le.s32.totalorder 1, %s14
      %p119 = scmp.lt.s32.totalorder %s14, 3
      %p120 = pnand %p118, %p119
      %p121 = pneg %p120
      // Predicated region
      $region9: #{tpu_custom_call.1} parent=5 // pred_check
        _
      $region10: #{tpu_custom_call.1} parent=5 // pred_check_branch
        %123 = sbr.rel (%p120) target = $region12
      $region11: #{tpu_custom_call.1} parent=5 // pred_region
        %s124 = ssub.s32 %s14, 1
      $region12: #{tpu_custom_call.1} parent=5 // pred_fallthru
        _
      %p125 = scmp.lt.s32.totalorder %s14, 2
      // Predicated region
      $region13: #{tpu_custom_call.1} parent=5 // pred_check
        %p126 = pneg %p125
      $region14: #{tpu_custom_call.1} parent=5 // pred_check_branch
        %128 = sbr.rel (%p126) target = $region16
      $region15: #{tpu_custom_call.1} parent=5 // pred_region
        // Predicated region
        $region17: #{tpu_custom_call.1} parent=15 // pred_check
          %p129 = pneg %p48
        $region18: #{tpu_custom_call.1} parent=15 // pred_check_branch
          %131 = sbr.rel (%p129) target = $region20
        $region19: #{tpu_custom_call.1} parent=15 // pred_region
          %s132 = sand.u32 %s38, 1
          %s133 = scalar_lea.sflag [#allocation3], %s132
          %s134 = sand.u32 %s38, 1
          %s135 = smul.addr %s134, 48
          %s136 = scalar_lea.vmem [#allocation2], %s135
          %s137 = smul.u32 3, %s22
          %139 = vsyncadd %s133, 0
          %s140 = smul.addr %s137, 2
          %s141 = smul.addr %s21, 6
          %s142 = sadd.s32 %s140, %s141
          %s143 = smul.addr %s142, 8
          %s144 = scalar_lea.hbm %s0, %s143
          %s145 = sshll.u32 %s144, 4
          %s146 = int_to_ptr.hbm [resolvable:$true] %s145
          %s147 = sshll.u32 %s136, 4
          %s148 = int_to_ptr.vmem [resolvable:$true] %s147
          %153 = dma.hbm_to_vmem [thread:$0]  %s146, 768, %s148, %s133, 128, 128, 8
        $region20: #{tpu_custom_call.1} parent=15 // pred_fallthru
          _
        // Predicated region
        $region21: #{tpu_custom_call.1} parent=15 // pred_check
          %p154 = pneg %p76
        $region22: #{tpu_custom_call.1} parent=15 // pred_check_branch
          %156 = sbr.rel (%p154) target = $region24
        $region23: #{tpu_custom_call.1} parent=15 // pred_region
          %s157 = sand.u32 %s66, 1
          %s158 = scalar_lea.sflag [#allocation5], %s157
          %s159 = sand.u32 %s66, 1
          %s160 = smul.addr %s159, 48
          %s161 = scalar_lea.vmem [#allocation4], %s160
          %s162 = smul.u32 3, %s22
          %164 = vsyncadd %s158, 0
          %s165 = smul.addr %s162, 2
          %s166 = smul.addr %s21, 6
          %s167 = sadd.s32 %s165, %s166
          %s168 = smul.addr %s167, 8
          %s169 = scalar_lea.hbm %s1, %s168
          %s170 = sshll.u32 %s169, 4
          %s171 = int_to_ptr.hbm [resolvable:$true] %s170
          %s172 = sshll.u32 %s161, 4
          %s173 = int_to_ptr.vmem [resolvable:$true] %s172
          %178 = dma.hbm_to_vmem [thread:$0]  %s171, 768, %s173, %s158, 128, 128, 8
        $region24: #{tpu_custom_call.1} parent=15 // pred_fallthru
          _
      $region16: #{tpu_custom_call.1} parent=5 // pred_fallthru
        _
      %p179 = scmp.le.s32.totalorder 1, %s14
      %p180 = scmp.lt.s32.totalorder %s14, 3
      %p181 = pnand %p179, %p180
      %p182 = pneg %p181
      // Predicated region
      $region25: #{tpu_custom_call.1} parent=5 // pred_check
        _
      $region26: #{tpu_custom_call.1} parent=5 // pred_check_branch
        %184 = sbr.rel (%p181) target = $region28
      $region27: #{tpu_custom_call.1} parent=5 // pred_region
        %s185 = ssub.s32 %s14, 1
        %s186 = sand.u32 %s41, 1
        %s187 = scalar_lea.sflag [#allocation3], %s186
        %s188 = sand.u32 %s41, 1
        %s189 = smul.addr %s188, 48
        %s190 = scalar_lea.vmem [#allocation2], %s189
        // Predicated region
        $region29: #{tpu_custom_call.1} parent=27 // pred_check
          %p191 = pneg %p54
        $region30: #{tpu_custom_call.1} parent=27 // pred_check_branch
          %193 = sbr.rel (%p191) target = $region32
        $region31: #{tpu_custom_call.1} parent=27 // pred_region
          %195 = dma.done %s187, 768
        $region32: #{tpu_custom_call.1} parent=27 // pred_fallthru
          _
        %s196 = sand.u32 %s69, 1
        %s197 = scalar_lea.sflag [#allocation5], %s196
        %s198 = sand.u32 %s69, 1
        %s199 = smul.addr %s198, 48
        %s200 = scalar_lea.vmem [#allocation4], %s199
        // Predicated region
        $region33: #{tpu_custom_call.1} parent=27 // pred_check
          %p201 = pneg %p82
        $region34: #{tpu_custom_call.1} parent=27 // pred_check_branch
          %203 = sbr.rel (%p201) target = $region36
        $region35: #{tpu_custom_call.1} parent=27 // pred_region
          %205 = dma.done %s197, 768
        $region36: #{tpu_custom_call.1} parent=27 // pred_fallthru
          _
        %s206 = sand.u32 %s41, 1
        %s207 = scalar_lea.sflag [#allocation3], %s206
        %s208 = sand.u32 %s41, 1
        %s209 = smul.addr %s208, 48
        %s210 = scalar_lea.vmem [#allocation2], %s209
        %p211 = pneg %p54
        %p212 = pneg %p51
        %s213 = sand.u32 %s69, 1
        %s214 = scalar_lea.sflag [#allocation5], %s213
        %s215 = sand.u32 %s69, 1
        %s216 = smul.addr %s215, 48
        %s217 = scalar_lea.vmem [#allocation4], %s216
        %p218 = pneg %p82
        %p219 = pneg %p79
        %p220 = pneg %p110
        %p221 = pneg %p107
        %p222 = scmp.lt.s32.totalorder %s23, 1
        %s223 = scalar_select %p222, %s23, 1
        %p224 = scmp.lt.s32.totalorder %s24, 0
        %s225 = scalar_select %p224, %s24, 0
        %s226 = sadd.s32 %s225, %s223
        %s227 = scalar_lea.vmem %s2, %s226
        %s228 = smul.u32 3, %s24
        %s229 = smul.u32 3, %s24
        %p230 = scmp.lt.s32.totalorder %s23, 1
        %s231 = scalar_select %p230, %s23, 1
        %p232 = scmp.lt.s32.totalorder %s24, 0
        %s233 = scalar_select %p232, %s24, 0
        %s234 = sadd.s32 %s233, %s231
        %s235 = scalar_lea.vmem %s2, %s234
        %v236 = vlaneseq
        %v237 = vshrl.u32 %v236, 7
        %v238 = vlaneseq
        %v239 = vand.u32 %v238, 127
        %v240 = vsub.s32 %v239, %v237
        %vm241 = vcmp.eq.s32.totalorder %v240, 0
        %v242 = vsel %vm241, 0.0010283801, 0.0
        %vm243 = vcmp.eq.s32.totalorder %v240, 1
        %v244 = vsel %vm243, 0.007598758, %v242
        %vm245 = vcmp.eq.s32.totalorder %v240, 2
        %v246 = vsel %vm245, 0.036000773, %v244
        %vm247 = vcmp.eq.s32.totalorder %v240, 3
        %v248 = vsel %vm247, 0.10936069, %v246
        %vm249 = vcmp.eq.s32.totalorder %v240, 4
        %v250 = vsel %vm249, 0.21300554, %v248
        %vm251 = vcmp.eq.s32.totalorder %v240, 5
        %v252 = vsel %vm251, 0.26601171, %v250
        %vm253 = vcmp.eq.s32.totalorder %v240, 6
        %v254 = vsel %vm253, 0.21300554, %v252
        %vm255 = vcmp.eq.s32.totalorder %v240, 7
        %v256 = vsel %vm255, 0.10936069, %v254
        %vm257 = vcmp.eq.s32.totalorder %v240, 8
        %v258 = vsel %vm257, 0.036000773, %v256
        %vm259 = vcmp.eq.s32.totalorder %v240, 9
        %v260 = vsel %vm259, 0.007598758, %v258
        %vm261 = vcmp.eq.s32.totalorder %v240, 10
        %v262 = vsel %vm261, 0.0010283801, %v260
        %v263 = vadd.s32 %v237, 8
        %v264 = vsub.s32 %v237, %v239
        %v265 = vsub.s32 %v263, %v239
        %vm266 = vcmp.eq.s32.totalorder %v264, 0
        %vm267 = vcmp.eq.s32.totalorder %v265, 0
        %v268 = vsel %vm266, 0.0010283801, 0.0
        %v269 = vsel %vm267, 0.0010283801, 0.0
        %vm270 = vcmp.eq.s32.totalorder %v264, 1
        %vm271 = vcmp.eq.s32.totalorder %v265, 1
        %v272 = vsel %vm270, 0.007598758, %v268
        %v273 = vsel %vm271, 0.007598758, %v269
        %vm274 = vcmp.eq.s32.totalorder %v264, 2
        %vm275 = vcmp.eq.s32.totalorder %v265, 2
        %v276 = vsel %vm274, 0.036000773, %v272
        %v277 = vsel %vm275, 0.036000773, %v273
        %vm278 = vcmp.eq.s32.totalorder %v264, 3
        %vm279 = vcmp.eq.s32.totalorder %v265, 3
        %v280 = vsel %vm278, 0.10936069, %v276
        %v281 = vsel %vm279, 0.10936069, %v277
        %vm282 = vcmp.eq.s32.totalorder %v264, 4
        %vm283 = vcmp.eq.s32.totalorder %v265, 4
        %v284 = vsel %vm282, 0.21300554, %v280
        %v285 = vsel %vm283, 0.21300554, %v281
        %vm286 = vcmp.eq.s32.totalorder %v264, 5
        %vm287 = vcmp.eq.s32.totalorder %v265, 5
        %v288 = vsel %vm286, 0.26601171, %v284
        %v289 = vsel %vm287, 0.26601171, %v285
        %vm290 = vcmp.eq.s32.totalorder %v264, 6
        %vm291 = vcmp.eq.s32.totalorder %v265, 6
        %v292 = vsel %vm290, 0.21300554, %v288
        %v293 = vsel %vm291, 0.21300554, %v289
        %vm294 = vcmp.eq.s32.totalorder %v264, 7
        %vm295 = vcmp.eq.s32.totalorder %v265, 7
        %v296 = vsel %vm294, 0.10936069, %v292
        %v297 = vsel %vm295, 0.10936069, %v293
        %vm298 = vcmp.eq.s32.totalorder %v264, 8
        %vm299 = vcmp.eq.s32.totalorder %v265, 8
        %v300 = vsel %vm298, 0.036000773, %v296
        %v301 = vsel %vm299, 0.036000773, %v297
        %vm302 = vcmp.eq.s32.totalorder %v264, 9
        %vm303 = vcmp.eq.s32.totalorder %v265, 9
        %v304 = vsel %vm302, 0.007598758, %v300
        %v305 = vsel %vm303, 0.007598758, %v301
        %vm306 = vcmp.eq.s32.totalorder %v264, 10
        %vm307 = vcmp.eq.s32.totalorder %v265, 10
        %v308 = vsel %vm306, 0.0010283801, %v304
        %v309 = vsel %vm307, 0.0010283801, %v305
        %v310 = vld [vmem:[%s190] sm:$0xff]
        %v311 = vld [vmem:[%s190 + $0x8] sm:$0xff]
        %v312 = vld [vmem:[%s190 + $0x10] sm:$0xff]
        %v313 = vld [vmem:[%s190 + $0x18] sm:$0xff]
        %v314 = vld [vmem:[%s190 + $0x20] sm:$0xff]
        %v315 = vld [vmem:[%s190 + $0x28] sm:$0xff]
        %v316 = vld [vmem:[%s200] sm:$0xff]
        %v317 = vld [vmem:[%s200 + $0x8] sm:$0xff]
        %v318 = vld [vmem:[%s200 + $0x10] sm:$0xff]
        %v319 = vld [vmem:[%s200 + $0x18] sm:$0xff]
        %v320 = vld [vmem:[%s200 + $0x20] sm:$0xff]
        %v321 = vld [vmem:[%s200 + $0x28] sm:$0xff]
        %324 = vrot.lane.b32.xlu0 %v312, 16
        %v325 = vpop.permute.xlu0 %324
        %326 = vrot.lane.b32.xlu0 %v313, 16
        %v327 = vpop.permute.xlu0 %326
        %332 = vrot.lane.b32.xlu0 %v314, 32
        %v333 = vpop.permute.xlu0 %332
        %334 = vrot.lane.b32.xlu0 %v315, 32
        %v335 = vpop.permute.xlu0 %334
        %vm338 = vcmask 130048
        %v339 = vsel %vm338, %v310, %v325
        %v340 = vsel %vm338, %v311, %v327
        %vm341 = vcmask 261120
        %v342 = vsel %vm341, %v339, %v333
        %v343 = vsel %vm341, %v340, %v335
        %346 = vrot.lane.b32.xlu0 %v318, 16
        %v347 = vpop.permute.xlu0 %346
        %348 = vrot.lane.b32.xlu0 %v319, 16
        %v349 = vpop.permute.xlu0 %348
        %354 = vrot.lane.b32.xlu0 %v320, 32
        %v355 = vpop.permute.xlu0 %354
        %356 = vrot.lane.b32.xlu0 %v321, 32
        %v357 = vpop.permute.xlu0 %356
        %v360 = vsel %vm338, %v316, %v347
        %v361 = vsel %vm338, %v317, %v349
        %v362 = vsel %vm341, %v360, %v355
        %v363 = vsel %vm341, %v361, %v357
        %v364 = vmul.f32 %v342, %v342
        %v365 = vmul.f32 %v343, %v343
        %v366 = vmul.f32 %v362, %v362
        %v367 = vmul.f32 %v363, %v363
        %v368 = vmul.f32 %v342, %v362
        %v369 = vmul.f32 %v343, %v363
        %372 = vrot.lane.b32.xlu0 %v362, 48
        %v373 = vpop.permute.xlu0 %372
        %374 = vrot.lane.b32.xlu0 %v363, 48
        %v375 = vpop.permute.xlu0 %374
        %380 = vrot.lane.b32.xlu0 %v364, 96
        %v381 = vpop.permute.xlu0 %380
        %382 = vrot.lane.b32.xlu0 %v365, 96
        %v383 = vpop.permute.xlu0 %382
        %388 = vrot.lane.b32.xlu0 %v366, 16
        %v389 = vpop.permute.xlu0 %388
        %390 = vrot.lane.b32.xlu0 %v367, 16
        %v391 = vpop.permute.xlu0 %390
        %396 = vrot.lane.b32.xlu0 %v368, 64
        %v397 = vpop.permute.xlu0 %396
        %398 = vrot.lane.b32.xlu0 %v369, 64
        %v399 = vpop.permute.xlu0 %398
        %vm402 = vcmask 392192
        %v403 = vsel %vm402, %v342, %v373
        %v404 = vsel %vm402, %v343, %v375
        %vm405 = vcmask 785408
        %v406 = vsel %vm405, %v403, %v381
        %v407 = vsel %vm405, %v404, %v383
        %v408 = vsel %vm338, %v381, %v389
        %v409 = vsel %vm338, %v383, %v391
        %vm410 = vcmask 523264
        %v411 = vsel %vm410, %v408, %v397
        %v412 = vsel %vm410, %v409, %v399
        %v414 = vsel %vm338, %v262, 0
        %416 = vmatpush.msra.mxu0 0.0
        %417 = vmatpush.msra.mxu0 0.0
        %418 = vmatpush.msra.mxu0 0.0
        %419 = vmatpush.msra.mxu0 0.0
        %420 = vmatpush.msra.mxu0 0.0
        %421 = vmatpush.msra.mxu0 0.0
        %422 = vmatpush.msra.mxu0 0.0
        %423 = vmatpush.msra.mxu0 0.0
        %424 = vmatpush.msra.mxu0 0.0
        %425 = vmatpush.msra.mxu0 0.0
        %426 = vmatpush.msra.mxu0 0.0
        %427 = vmatpush.msra.mxu0 0.0
        %428 = vmatpush.msra.mxu0 0.0
        %429 = vmatpush.msra.mxu0 0.0
        %430 = vmatpush.msra.mxu0 %v407
        %431 = vmatpush.msra.mxu0 %v406
        %432 = vmatmul.f32.gmra.mxu0 %v414
        %v433 = vpop.f32.mrf.mxu0
        %v434 = vadd.f32 0.0, %v433
        %435 = vdwg.mxu0
        %436 = vmatpush.msra.mxu0 0.0
        %437 = vmatpush.msra.mxu0 0.0
        %438 = vmatpush.msra.mxu0 0.0
        %439 = vmatpush.msra.mxu0 0.0
        %440 = vmatpush.msra.mxu0 0.0
        %441 = vmatpush.msra.mxu0 0.0
        %442 = vmatpush.msra.mxu0 0.0
        %443 = vmatpush.msra.mxu0 0.0
        %444 = vmatpush.msra.mxu0 0.0
        %445 = vmatpush.msra.mxu0 0.0
        %446 = vmatpush.msra.mxu0 0.0
        %447 = vmatpush.msra.mxu0 0.0
        %448 = vmatpush.msra.mxu0 0.0
        %449 = vmatpush.msra.mxu0 0.0
        %450 = vmatpush.msra.mxu0 %v412
        %451 = vmatpush.msra.mxu0 %v411
        %452 = vmatmul.f32.gmra.mxu0 %v414
        %v453 = vpop.f32.mrf.mxu0
        %v454 = vadd.f32 0.0, %v453
        %455 = vdwg.mxu0
        %v457 = vrot.slane %v434, 2
        %458 = vrot.lane.b32.xlu0 %v457, 112
        %v459 = vpop.permute.xlu0 %458
        %v461 = vrot.slane %v434, 4
        %462 = vrot.lane.b32.xlu0 %v461, 96
        %v463 = vpop.permute.xlu0 %462
        %v465 = vrot.slane %v434, 6
        %466 = vrot.lane.b32.xlu0 %v465, 80
        %v467 = vpop.permute.xlu0 %466
        %469 = vrot.lane.b32.xlu0 %v434, 64
        %v470 = vpop.permute.xlu0 %469
        %472 = vrot.lane.b32.xlu0 %v457, 48
        %v473 = vpop.permute.xlu0 %472
        %475 = vrot.lane.b32.xlu0 %v461, 32
        %v476 = vpop.permute.xlu0 %475
        %478 = vrot.lane.b32.xlu0 %v465, 16
        %v479 = vpop.permute.xlu0 %478
        %v482 = vrot.slane %v454, 2
        %483 = vrot.lane.b32.xlu0 %v482, 112
        %v484 = vpop.permute.xlu0 %483
        %v486 = vrot.slane %v454, 4
        %487 = vrot.lane.b32.xlu0 %v486, 96
        %v488 = vpop.permute.xlu0 %487
        %v490 = vrot.slane %v454, 6
        %491 = vrot.lane.b32.xlu0 %v490, 80
        %v492 = vpop.permute.xlu0 %491
        %494 = vrot.lane.b32.xlu0 %v454, 64
        %v495 = vpop.permute.xlu0 %494
        %497 = vrot.lane.b32.xlu0 %v482, 48
        %v498 = vpop.permute.xlu0 %497
        %500 = vrot.lane.b32.xlu0 %v486, 32
        %v501 = vpop.permute.xlu0 %500
        %vm503 = vcmask 1045504
        %v504 = vsel %vm503, %v434, %v459
        %vm505 = vcmask 1043456
        %v506 = vsel %vm505, %v459, %v463
        %vm507 = vcmask 1041408
        %v508 = vsel %vm507, %v463, %v467
        %v509 = vsel %vm503, %v470, %v473
        %v510 = vsel %vm505, %v473, %v476
        %v511 = vsel %vm507, %v476, %v479
        %v512 = vsel %vm503, %v454, %v484
        %v513 = vsel %vm505, %v484, %v488
        %v514 = vsel %vm507, %v488, %v492
        %v515 = vsel %vm503, %v495, %v498
        %v516 = vsel %vm505, %v498, %v501
        %v518 = vsel %vm338, %v504, 0
        %v521 = vsel %vm338, %v506, 0
        %v524 = vsel %vm338, %v508, 0
        %v527 = vsel %vm338, %v509, 0
        %v530 = vsel %vm338, %v510, 0
        %v533 = vsel %vm338, %v511, 0
        %v536 = vsel %vm338, %v512, 0
        %v539 = vsel %vm338, %v513, 0
        %v542 = vsel %vm338, %v514, 0
        %v545 = vsel %vm338, %v515, 0
        %v548 = vsel %vm338, %v516, 0
        %v550 = vsel %vm338, %v501, 0
        %552 = vmatpush.msra.mxu0 0.0
        %553 = vmatpush.msra.mxu0 0.0
        %554 = vmatpush.msra.mxu0 0.0
        %555 = vmatpush.msra.mxu0 0.0
        %556 = vmatpush.msra.mxu0 0.0
        %557 = vmatpush.msra.mxu0 0.0
        %558 = vmatpush.msra.mxu0 0.0
        %559 = vmatpush.msra.mxu0 0.0
        %560 = vmatpush.msra.mxu0 0.0
        %561 = vmatpush.msra.mxu0 0.0
        %562 = vmatpush.msra.mxu0 0.0
        %563 = vmatpush.msra.mxu0 0.0
        %564 = vmatpush.msra.mxu0 0.0
        %565 = vmatpush.msra.mxu0 0.0
        %566 = vmatpush.msra.mxu0 %v309
        %567 = vmatpush.msra.mxu0 %v308
        %568 = vmatmul.f32.gmra.mxu0 %v518
        %v569 = vpop.f32.mrf.mxu0
        %v570 = vadd.f32 0.0, %v569
        %571 = vmatmul.f32.gmra.mxu0 %v521
        %v572 = vpop.f32.mrf.mxu0
        %v573 = vadd.f32 0.0, %v572
        %574 = vmatmul.f32.gmra.mxu0 %v524
        %v575 = vpop.f32.mrf.mxu0
        %v576 = vadd.f32 0.0, %v575
        %577 = vmatmul.f32.gmra.mxu0 %v527
        %v578 = vpop.f32.mrf.mxu0
        %v579 = vadd.f32 0.0, %v578
        %580 = vmatmul.f32.gmra.mxu0 %v530
        %v581 = vpop.f32.mrf.mxu0
        %v582 = vadd.f32 0.0, %v581
        %583 = vmatmul.f32.gmra.mxu0 %v533
        %v584 = vpop.f32.mrf.mxu0
        %v585 = vadd.f32 0.0, %v584
        %586 = vmatmul.f32.gmra.mxu0 %v536
        %v587 = vpop.f32.mrf.mxu0
        %v588 = vadd.f32 0.0, %v587
        %589 = vmatmul.f32.gmra.mxu0 %v539
        %v590 = vpop.f32.mrf.mxu0
        %v591 = vadd.f32 0.0, %v590
        %592 = vmatmul.f32.gmra.mxu0 %v542
        %v593 = vpop.f32.mrf.mxu0
        %v594 = vadd.f32 0.0, %v593
        %595 = vmatmul.f32.gmra.mxu0 %v545
        %v596 = vpop.f32.mrf.mxu0
        %v597 = vadd.f32 0.0, %v596
        %598 = vmatmul.f32.gmra.mxu0 %v548
        %v599 = vpop.f32.mrf.mxu0
        %v600 = vadd.f32 0.0, %v599
        %601 = vmatmul.f32.gmra.mxu0 %v550
        %v602 = vpop.f32.mrf.mxu0
        %v603 = vadd.f32 0.0, %v602
        %604 = vdwg.mxu0
        %v605 = vmul.f32 %v570, %v570
        %v606 = vmul.f32 %v573, %v573
        %v607 = vmul.f32 %v576, %v576
        %v608 = vmul.f32 %v579, %v579
        %v609 = vmul.f32 %v582, %v582
        %v613 = vrot.slane %v576, 2
        %v614 = vrot.slane %v579, 2
        %v615 = vsel %vm503, %v613, %v614
        %v616 = vrot.slane %v582, 2
        %v617 = vsel %vm503, %v614, %v616
        %v621 = vmul.f32 %v570, %v615
        %v622 = vmul.f32 %v573, %v617
        %v623 = vmul.f32 %v576, %v616
        %v627 = vrot.slane %v605, 4
        %v628 = vrot.slane %v606, 4
        %v629 = vsel %vm505, %v627, %v628
        %v630 = vrot.slane %v607, 4
        %v631 = vsel %vm505, %v628, %v630
        %v635 = vsub.f32 %v582, %v627
        %v636 = vsub.f32 %v585, %v629
        %v637 = vsub.f32 %v588, %v631
        %v640 = vrot.slane %v608, 4
        %v641 = vsel %vm505, %v630, %v640
        %v642 = vrot.slane %v609, 4
        %v643 = vsel %vm505, %v640, %v642
        %v647 = vsub.f32 %v588, %v630
        %v648 = vsub.f32 %v591, %v641
        %v649 = vsub.f32 %v594, %v643
        %v650 = vsub.f32 %v597, %v621
        %v651 = vsub.f32 %v600, %v622
        %v652 = vsub.f32 %v603, %v623
        %v653 = vmul.f32 %v650, 2.0
        %v654 = vmul.f32 %v651, 2.0
        %v655 = vmul.f32 %v652, 2.0
        %v656 = vadd.f32 %v653, 0.0009
        %v657 = vadd.f32 %v654, 0.0009
        %v658 = vadd.f32 %v655, 0.0009
        %v662 = vrot.slane %v647, 2
        %v663 = vrot.slane %v648, 2
        %v664 = vsel %vm503, %v662, %v663
        %v665 = vrot.slane %v649, 2
        %v666 = vsel %vm503, %v663, %v665
        %v670 = vadd.f32 %v635, %v664
        %v671 = vadd.f32 %v636, %v666
        %v672 = vadd.f32 %v637, %v665
        %v673 = vadd.f32 %v670, 0.0009
        %v674 = vadd.f32 %v671, 0.0009
        %v675 = vadd.f32 %v672, 0.0009
        %v679 = vrot.slane %v673, 4
        %v680 = vrot.slane %v674, 4
        %v681 = vsel %vm505, %v679, %v680
        %v682 = vrot.slane %v675, 4
        %v683 = vsel %vm505, %v680, %v682
        %v687 = vrcp.pop %v681
        %v688 = vmul.f32 %v681, %v687
        %v689 = vsub.f32 1.0, %v688
        %v690 = vmul.f32 %v687, %v689
        %v691 = vadd.f32 %v687, %v690
        %vm692 = vweird.f32 %v681
        %vm693 = vweird.f32 %v687
        %vm694 = vmor %vm692, %vm693
        %v695 = vsel %vm694, %v687, %v691
        %v696 = vand.u32 2147483647, %v681
        %vm697 = vcmp.eq.f32.partialorder %v696, 8.507059e+37
        %v698 = vand.u32 %v681, 2147483648
        %v699 = vor.u32 1.1754944e-38, %v698
        %v700 = vsel %vm697, %v699, %v695
        %v701 = vmul.f32 %v656, %v700
        %v702 = vrcp.pop %v683
        %v703 = vmul.f32 %v683, %v702
        %v704 = vsub.f32 1.0, %v703
        %v705 = vmul.f32 %v702, %v704
        %v706 = vadd.f32 %v702, %v705
        %vm707 = vweird.f32 %v683
        %vm708 = vweird.f32 %v702
        %vm709 = vmor %vm707, %vm708
        %v710 = vsel %vm709, %v702, %v706
        %v711 = vand.u32 2147483647, %v683
        %vm712 = vcmp.eq.f32.partialorder %v711, 8.507059e+37
        %v713 = vand.u32 %v683, 2147483648
        %v714 = vor.u32 1.1754944e-38, %v713
        %v715 = vsel %vm712, %v714, %v710
        %v716 = vmul.f32 %v657, %v715
        %v717 = vrcp.pop %v682
        %v718 = vmul.f32 %v682, %v717
        %v719 = vsub.f32 1.0, %v718
        %v720 = vmul.f32 %v717, %v719
        %v721 = vadd.f32 %v717, %v720
        %vm722 = vweird.f32 %v682
        %vm723 = vweird.f32 %v717
        %vm724 = vmor %vm722, %vm723
        %v725 = vsel %vm724, %v717, %v721
        %v726 = vand.u32 2147483647, %v682
        %vm727 = vcmp.eq.f32.partialorder %v726, 8.507059e+37
        %v728 = vand.u32 %v682, 2147483648
        %v729 = vor.u32 1.1754944e-38, %v728
        %v730 = vsel %vm727, %v729, %v725
        %v731 = vmul.f32 %v658, %v730
        %v732 = vmax.f32 %v701, 0.0
        %v733 = vmax.f32 %v716, 0.0
        %v734 = vmax.f32 %v731, 0.0
        %v735 = vmul.f32 %v621, 2.0
        %v736 = vmul.f32 %v622, 2.0
        %v737 = vmul.f32 %v623, 2.0
        %v738 = vadd.f32 %v735, 0.0001
        %v739 = vadd.f32 %v736, 0.0001
        %v740 = vadd.f32 %v737, 0.0001
        %v741 = vrot.slane %v607, 2
        %v742 = vrot.slane %v608, 2
        %v743 = vsel %vm503, %v741, %v742
        %v744 = vrot.slane %v609, 2
        %v745 = vsel %vm503, %v742, %v744
        %v749 = vadd.f32 %v605, %v743
        %v750 = vadd.f32 %v606, %v745
        %v751 = vadd.f32 %v607, %v744
        %v752 = vadd.f32 %v749, 0.0001
        %v753 = vadd.f32 %v750, 0.0001
        %v754 = vadd.f32 %v751, 0.0001
        %v755 = vrcp.pop %v752
        %v756 = vmul.f32 %v752, %v755
        %v757 = vsub.f32 1.0, %v756
        %v758 = vmul.f32 %v755, %v757
        %v759 = vadd.f32 %v755, %v758
        %vm760 = vweird.f32 %v752
        %vm761 = vweird.f32 %v755
        %vm762 = vmor %vm760, %vm761
        %v763 = vsel %vm762, %v755, %v759
        %v764 = vand.u32 2147483647, %v752
        %vm765 = vcmp.eq.f32.partialorder %v764, 8.507059e+37
        %v766 = vand.u32 %v752, 2147483648
        %v767 = vor.u32 1.1754944e-38, %v766
        %v768 = vsel %vm765, %v767, %v763
        %v769 = vmul.f32 %v738, %v768
        %v770 = vrcp.pop %v753
        %v771 = vmul.f32 %v753, %v770
        %v772 = vsub.f32 1.0, %v771
        %v773 = vmul.f32 %v770, %v772
        %v774 = vadd.f32 %v770, %v773
        %vm775 = vweird.f32 %v753
        %vm776 = vweird.f32 %v770
        %vm777 = vmor %vm775, %vm776
        %v778 = vsel %vm777, %v770, %v774
        %v779 = vand.u32 2147483647, %v753
        %vm780 = vcmp.eq.f32.partialorder %v779, 8.507059e+37
        %v781 = vand.u32 %v753, 2147483648
        %v782 = vor.u32 1.1754944e-38, %v781
        %v783 = vsel %vm780, %v782, %v778
        %v784 = vmul.f32 %v739, %v783
        %v785 = vrcp.pop %v754
        %v786 = vmul.f32 %v754, %v785
        %v787 = vsub.f32 1.0, %v786
        %v788 = vmul.f32 %v785, %v787
        %v789 = vadd.f32 %v785, %v788
        %vm790 = vweird.f32 %v754
        %vm791 = vweird.f32 %v785
        %vm792 = vmor %vm790, %vm791
        %v793 = vsel %vm792, %v785, %v789
        %v794 = vand.u32 2147483647, %v754
        %vm795 = vcmp.eq.f32.partialorder %v794, 8.507059e+37
        %v796 = vand.u32 %v754, 2147483648
        %v797 = vor.u32 1.1754944e-38, %v796
        %v798 = vsel %vm795, %v797, %v793
        %v799 = vmul.f32 %v740, %v798
        %v800 = vmul.f32 %v769, %v732
        %v801 = vmul.f32 %v784, %v733
        %v802 = vmul.f32 %v799, %v734
        %vm803 = vcmask 48128
        %v804 = vsel %vm803, %v800, 0.0
        %v805 = vsel %vm803, %v801, 0.0
        %v806 = vadd.f32 %v804, %v805
        %vm807 = vcmask 41984
        %v808 = vsel %vm807, %v802, 0.0
        %v809 = vadd.f32 %v806, %v808
        %810 = vadd.xlane.f32.xlu0 %v809
        %v811 = vpop.xlane.xlu0 %810
        %v812 = vrot.slane %v811, 4
        %v813 = vadd.f32 %v811, %v812
        %v814 = vrot.slane %v813, 2
        %v815 = vadd.f32 %v813, %v814
        %v816 = vrot.slane %v815, 1
        %v817 = vadd.f32 %v815, %v816
        %s818 = vtos %v817
        %v819 = vstv %s818
        %v820 = vadd.f32 %v819, 0.0
        %vm821 = vcmask 0
        %822 = vst.msk [vmem:[%s235] sm:$0x1] %vm821, %v820
        %p823 = scmp.lt.s32.totalorder %s23, 1
        %s824 = scalar_select %p823, %s23, 1
        %p825 = scmp.lt.s32.totalorder %s24, 0
        %s826 = scalar_select %p825, %s24, 0
        %s827 = sadd.s32 %s826, %s824
        %s828 = scalar_lea.vmem %s2, %s827
        // Predicated region
        $region37: #{tpu_custom_call.1} parent=27 // pred_check
          %p829 = pneg %p107
        $region38: #{tpu_custom_call.1} parent=27 // pred_check_branch
          %831 = sbr.rel (%p829) target = $region40
        $region39: #{tpu_custom_call.1} parent=27 // pred_region
          _
        $region40: #{tpu_custom_call.1} parent=27 // pred_fallthru
          _
      $region28: #{tpu_custom_call.1} parent=5 // pred_fallthru
        _
      %p832 = scmp.le.s32.totalorder 2, %s14
      // Predicated region
      $region41: #{tpu_custom_call.1} parent=5 // pred_check
        %p833 = pneg %p832
      $region42: #{tpu_custom_call.1} parent=5 // pred_check_branch
        %835 = sbr.rel (%p833) target = $region44
      $region43: #{tpu_custom_call.1} parent=5 // pred_region
        %s836 = ssub.s32 %s14, 2
        // Predicated region
        $region45: #{tpu_custom_call.1} parent=43 // pred_check
          %p837 = pneg %p113
        $region46: #{tpu_custom_call.1} parent=43 // pred_check_branch
          %839 = sbr.rel (%p837) target = $region48
        $region47: #{tpu_custom_call.1} parent=43 // pred_region
          %p840 = scmp.lt.s32.totalorder %s25, 1
          %s841 = scalar_select %p840, %s25, 1
          %p842 = scmp.lt.s32.totalorder %s26, 0
          %s843 = scalar_select %p842, %s26, 0
          %s844 = sadd.s32 %s843, %s841
          %s845 = scalar_lea.vmem %s2, %s844
        $region48: #{tpu_custom_call.1} parent=43 // pred_fallthru
          _
      $region44: #{tpu_custom_call.1} parent=5 // pred_fallthru
        _
    $region6: #{tpu_custom_call.1} parent=1 // loop_footer
      %s18 = sadd.s32 1, %s14
    $region7: #{tpu_custom_call.1} parent=1 // loop_footer_branch
      %13 = sbr.rel target = $region3
    $region8: #{tpu_custom_call.1} parent=1 // loop_exit
      _
    %846 = vsyncpa [#allocation3], 1
    %s847 = scalar_lea.sflag [#allocation3], 1
    %848 = vsyncpa %s847, 1
    %849 = vsyncpa [#allocation5], 1
    %s850 = scalar_lea.sflag [#allocation5], 1
    %851 = vsyncpa %s850, 1

</llo_original>
